<compile_context>
chip_gen: v6e
topology: v6e:2x2x1
jax: 0.10.0
libtpu: 0.0.40
codegen_flags: <defaults>
</compile_context>

<pallas_src>
import functools

import jax
import jax.numpy as jnp
from jax import lax
from jax.experimental import pallas as pl
from jax.experimental.pallas import tpu as pltpu


_TMP_F32_ARRAYS = 6            # logits, exp, p, t, p*t + slack (f32, C x tile)
_FIXED_OVERHEAD = 2 << 20      # misc small buffers / compiler scratch headroom


def _vmem_capacity_bytes():
    """Physical VMEM of the current TPU; conservative (v7x) fallback."""
    try:
        info = pltpu.get_tpu_info()
        cap = getattr(info, "vmem_capacity_bytes", None)
        if cap:
            return int(cap)
    except Exception:
        pass
    return 64 << 20


def _choose_tile_units(total_units, quantum, lanes_per_unit, in_bytes_per_lane,
                       c, batch, spatial_tile_lanes):
    """Pick the spatial tile (in layout units) from the working-set model."""
    if spatial_tile_lanes is not None:           # explicit override (tests)
        u = max(1, int(spatial_tile_lanes) // lanes_per_unit)
        if u >= total_units:
            return total_units
        return max(quantum, (u // quantum) * quantum)

    if total_units <= quantum:
        return total_units

    # Full per-step working set: double-buffered inputs + f32 temporaries.
    bytes_per_unit = lanes_per_unit * (2 * in_bytes_per_lane
                                       + _TMP_F32_ARRAYS * c * 4 + 16)
    cap = _vmem_capacity_bytes()
    budget = min(int(cap * 0.7), 64 << 20) - _FIXED_OVERHEAD
    max_u = max(quantum, budget // max(bytes_per_unit, 1))

    # Keep each f32 temporary to a few MiB and the lane count sane.
    lane_cap = min(64 * 1024, (1 << 20) // max(c, 1))
    max_u = min(max_u, max(quantum, lane_cap // lanes_per_unit))
    max_u = min(max_u, total_units)

    # Keep both TensorCores busy when the batch alone cannot.
    if batch == 1 and max_u >= total_units:
        max_u = -(-total_units // 2)             # ceil(total / 2)

    if max_u >= total_units:
        return total_units
    max_u = max(quantum, (max_u // quantum) * quantum)
    if max_u >= total_units:
        return total_units

    # Prefer a tile that divides the extent evenly (no ragged last tile).
    u = max_u
    lo = max(quantum, max_u // 2)
    while u >= lo:
        if total_units % u == 0:
            return u
        u -= quantum
    return max_u


def _jaccard_partial_kernel(tgt_ref, yp_ref, out_ref, *, c, total_units,
                            tile_units, ignore_index, from_labels, ragged):
    """One (batch, spatial-tile) grid step.

    Writes a lane-dense (2, 128) block: row 0 = intersection partial sum,
    row 1 = (sum_p + sum_t - intersection) partial sum (scalar broadcast
    across lanes; the wrapper reads lane 0 and adds the epsilon term).
    """
    logits = yp_ref[0].astype(jnp.float32)               # (C, *spatial)
    spatial = logits.shape[1:]

    valid = None
    if ragged:
        pos = (pl.program_id(1) * tile_units
               + lax.broadcasted_iota(jnp.int32, (1,) + spatial, 1))
        valid = pos < total_units                         # (1, *spatial)

    # Channel softmax; the channel axis is the leading (non-tiled) axis, so
    # max/sum are cross-vreg VALU ops in the repacked layout.  Division via
    # the EUP reciprocal (its own issue slot).
    m = jnp.max(logits, axis=0, keepdims=True)
    e = jnp.exp(logits - m)
    denom = jnp.sum(e, axis=0, keepdims=True)
    p = e * pl.reciprocal(denom, approx=True)             # (C, *spatial)
    if ragged:
        # Single full-tile select: zeroes softmax garbage from block padding.
        p = jnp.where(valid, p, 0.0)

    sum_p = jnp.sum(p)
    if ignore_index is not None:
        sum_p = sum_p - jnp.sum(p[ignore_index:ignore_index + 1])

    if from_labels:
        lab = tgt_ref[0]                                   # (1, *spatial) i32
        if ragged:
            lab = jnp.where(valid, lab, -1)
        keep = (lab >= 0) & (lab < c)
        if ignore_index is not None:
            keep = keep & (lab != ignore_index)
            lab = jnp.where(lab == ignore_index, -1, lab)
        sum_t = jnp.sum(keep.astype(jnp.float32))          # = sum of one-hot t
        ch = lax.broadcasted_iota(jnp.int32, (c,) + spatial, 0)
        t = (ch == lab).astype(jnp.float32)                # on-the-fly one-hot
        inter = jnp.sum(p * t)
    else:
        t = tgt_ref[0].astype(jnp.float32)                 # (C, *spatial)
        if ragged:
            t = jnp.where(valid, t, 0.0)
        inter = jnp.sum(p * t)
        sum_t = jnp.sum(t)
        if ignore_index is not None:
            ig = ignore_index
            inter = inter - jnp.sum(p[ig:ig + 1] * t[ig:ig + 1])
            sum_t = sum_t - jnp.sum(t[ig:ig + 1])

    # union = sum(p + t - p*t) over kept channels / valid pixels; the +1e-10
    # epsilon is a constant and is added once in the wrapper.
    union = sum_p + sum_t - inter

    row = lax.broadcasted_iota(jnp.int32, (2, 128), 0)
    out_ref[0, 0] = jnp.where(row == 0, inter, union)


def softmax_jaccard_with_logits_loss(y_pred, y, *, reduction='mean',
                                     ignore_index=None, weights=None,
                                     spatial_tile=None,
                                     dense_target_dtype=None):
    """Forward pass of SoftmaxJaccardWithLogitsLoss.

    `weights` is unused (it is also unused by the PyTorch forward).
    `mean` and `sum` reductions return identical values (the normalisation
    cancels inside intersection/union), matching the reference module.
    `dense_target_dtype` (e.g. jnp.bfloat16) optionally downcasts a dense
    probability target in HBM to halve input bandwidth; default keeps the
    caller's dtype exactly.
    """
    assert reduction in ('mean', 'sum')
    del weights, reduction  # no effect on the result (see docstring)

    b, c = y_pred.shape[0], y_pred.shape[1]
    s = 1
    for d in y_pred.shape[2:]:
        s *= d

    from_labels = (y_pred.ndim != y.ndim)
    if from_labels:
        if y.shape != (y_pred.shape[0],) + y_pred.shape[2:]:
            raise ValueError(f'Shapes mismatch: {y_pred.shape} vs {y.shape}')
        tgt_flat = y.astype(jnp.int32)                 # label map stays integer
        tgt_px_bytes = 4
    else:
        if y.shape != y_pred.shape:
            raise ValueError(f'Shapes mismatch: {y_pred.shape} vs {y.shape}')
        tgt_flat = (y if dense_target_dtype is None
                    else y.astype(dense_target_dtype))
        tgt_px_bytes = c * jnp.dtype(tgt_flat.dtype).itemsize

    yp_item = jnp.dtype(y_pred.dtype).itemsize
    in_bytes_per_lane = c * yp_item + tgt_px_bytes

    # Layout A (repacked): channels on the outer axis, spatial fills sublanes
    # and lanes — requires S % 128 == 0.  Layout B (flat) otherwise.
    repacked = (s >= 128) and (s % 128 == 0)
    if repacked:
        lanes_per_unit, total_units, quantum = 128, s // 128, 8
    else:
        lanes_per_unit, total_units, quantum = 1, s, 128

    tu = _choose_tile_units(total_units, quantum, lanes_per_unit,
                            in_bytes_per_lane, c, b, spatial_tile)
    nt = pl.cdiv(total_units, tu)
    ragged = (total_units % tu) != 0

    if repacked:
        yp = y_pred.reshape(b, c, total_units, 128)
        yp_spec = pl.BlockSpec((1, c, tu, 128), lambda i, j: (i, 0, j, 0))
        if from_labels:
            tgt = tgt_flat.reshape(b, 1, total_units, 128)
            tgt_spec = pl.BlockSpec((1, 1, tu, 128), lambda i, j: (i, 0, j, 0))
        else:
            tgt = tgt_flat.reshape(b, c, total_units, 128)
            tgt_spec = pl.BlockSpec((1, c, tu, 128), lambda i, j: (i, 0, j, 0))
    else:
        yp = y_pred.reshape(b, c, s)
        yp_spec = pl.BlockSpec((1, c, tu), lambda i, j: (i, 0, j))
        if from_labels:
            tgt = tgt_flat.reshape(b, 1, s)
            tgt_spec = pl.BlockSpec((1, 1, tu), lambda i, j: (i, 0, j))
        else:
            tgt = tgt_flat.reshape(b, c, s)
            tgt_spec = pl.BlockSpec((1, c, tu), lambda i, j: (i, 0, j))

    kernel = functools.partial(
        _jaccard_partial_kernel, c=c, total_units=total_units, tile_units=tu,
        ignore_index=ignore_index, from_labels=from_labels, ragged=ragged)

    # vmem_limit derived from the same working-set model used for tiling.
    ws = (2 * tu * lanes_per_unit * in_bytes_per_lane
          + _TMP_F32_ARRAYS * c * tu * lanes_per_unit * 4
          + _FIXED_OVERHEAD)
    cap = _vmem_capacity_bytes()
    vmem_limit = int(min(max(ws + (4 << 20), 16 << 20), int(cap * 0.9)))

    partials = pl.pallas_call(
        kernel,
        out_shape=jax.ShapeDtypeStruct((b, nt, 2, 128), jnp.float32),
        grid=(b, nt),
        in_specs=[tgt_spec, yp_spec],
        out_specs=pl.BlockSpec((1, 1, 2, 128), lambda i, j: (i, j, 0, 0)),
        compiler_params=pltpu.CompilerParams(
            dimension_semantics=("parallel", "parallel"),
            vmem_limit_bytes=vmem_limit),
    )(tgt, yp)

    inter = jnp.sum(partials[:, :, 0, 0])
    union = jnp.sum(partials[:, :, 1, 0])
    c_kept = c - (1 if ignore_index is not None else 0)
    union = union + (1e-10 * s * b * c_kept)   # epsilon folded out of the kernel
    return 1.0 - inter / union


def _reference(y_pred, y, reduction='mean', ignore_index=None):
    """Pure-JAX reference mirroring the PyTorch forward, for verification."""
    p = jax.nn.softmax(y_pred.astype(jnp.float32), axis=1)
    b, c = p.shape[0], p.shape[1]
    if p.ndim != y.ndim:
        y = jax.nn.one_hot(y, c, axis=1, dtype=p.dtype)
    p = p.reshape(b, c, -1)
    y = y.reshape(b, c, -1).astype(jnp.float32)
    inter = p * y
    union = p + y - inter + 1e-10
    inter = jnp.sum(inter, axis=-1)
    union = jnp.sum(union, axis=-1)
    if ignore_index is not None:
        idx = [i for i in range(c) if i != ignore_index]
        inter = inter[:, idx]
        union = union[:, idx]
    if reduction == 'mean':
        inter, union = jnp.mean(inter), jnp.mean(union)
    else:
        inter, union = jnp.sum(inter), jnp.sum(union)
    return 1.0 - inter / union


if __name__ == "__main__":
    key = jax.random.PRNGKey(0)
    ks = jax.random.split(key, 8)

    # Case 1: label map, S % 128 == 0 -> repacked lane-dense layout, one tile.
    B, C, H, W = 2, 4, 16, 16
    y_pred = jax.random.normal(ks[0], (B, C, H, W), dtype=jnp.float32)
    y_lab = jax.random.randint(ks[1], (B, H, W), 0, C, dtype=jnp.int32)
    out = jax.block_until_ready(
        softmax_jaccard_with_logits_loss(y_pred, y_lab, reduction='mean'))
    ref = _reference(y_pred, y_lab, reduction='mean')
    assert jnp.allclose(out, ref, rtol=2e-3, atol=2e-3), (out, ref)

    # Case 2: label map, S not a multiple of 128 -> flat layout, ragged last
    # tile + ignore_index (forced small tile).
    B2, C2, H2, W2 = 2, 5, 24, 20              # S = 480 = 3*128 + 96
    yp2 = jax.random.normal(ks[2], (B2, C2, H2, W2), dtype=jnp.float32)
    yl2 = jax.random.randint(ks[3], (B2, H2, W2), 0, C2, dtype=jnp.int32)
    out2 = jax.block_until_ready(
        softmax_jaccard_with_logits_loss(yp2, yl2, reduction='sum',
                                         ignore_index=1, spatial_tile=128))
    ref2 = _reference(yp2, yl2, reduction='sum', ignore_index=1)
    assert jnp.allclose(out2, ref2, rtol=2e-3, atol=2e-3), (out2, ref2)

    # Case 3: dense (same-ndim) soft-target path, repacked layout.
    y_dense = jax.nn.softmax(jax.random.normal(ks[4], (B, C, H, W),
                                               dtype=jnp.float32), axis=1)
    out3 = jax.block_until_ready(
        softmax_jaccard_with_logits_loss(y_pred, y_dense, reduction='mean'))
    ref3 = _reference(y_pred, y_dense, reduction='mean')
    assert jnp.allclose(out3, ref3, rtol=2e-3, atol=2e-3), (out3, ref3)

    # Case 4: dense target + ignore_index on the flat layout with a ragged tile.
    yp4 = jax.random.normal(ks[5], (B2, C2, H2, W2), dtype=jnp.float32)
    yd4 = jax.nn.softmax(jax.random.normal(ks[6], (B2, C2, H2, W2),
                                           dtype=jnp.float32), axis=1)
    out4 = jax.block_until_ready(
        softmax_jaccard_with_logits_loss(yp4, yd4, reduction='mean',
                                         ignore_index=2, spatial_tile=256))
    ref4 = _reference(yp4, yd4, reduction='mean', ignore_index=2)
    assert jnp.allclose(out4, ref4, rtol=2e-3, atol=2e-3), (out4, ref4)

    # Case 5: batch=1 (spatial axis split across cores), repacked layout with
    # a ragged last tile.
    B5, C5, H5, W5 = 1, 3, 32, 48              # S = 1536 -> 12 rows of 128
    yp5 = jax.random.normal(ks[7], (B5, C5, H5, W5), dtype=jnp.float32)
    yl5 = jax.random.randint(ks[1], (B5, H5, W5), 0, C5, dtype=jnp.int32)
    out5 = jax.block_until_ready(
        softmax_jaccard_with_logits_loss(yp5, yl5, reduction='mean'))
    ref5 = _reference(yp5, yl5, reduction='mean')
    assert jnp.allclose(out5, ref5, rtol=2e-3, atol=2e-3), (out5, ref5)

    print("KERNEL_OK")
</pallas_src>

<mosaic_0001>
module attributes {stable_mosaic.version = 11 : i64} {
  func.func @_jaccard_partial_kernel(%arg0: i32, %arg1: i32, %arg2: memref<1x1x2x128xi32, #tpu.memory_space<vmem>>, %arg3: memref<1x4x2x128xf32, #tpu.memory_space<vmem>>, %arg4: memref<1x1x2x128xf32, #tpu.memory_space<vmem>>) attributes {dimension_semantics = [#tpu.dimension_semantics<parallel>, #tpu.dimension_semantics<parallel>], iteration_bounds = array<i64: 2, 1>, scalar_prefetch = 0 : i64, scratch_operands = 0 : i64, tpu.core_type = #tpu.core_type<tc>, window_params = [{transform_indices = @transform_0, window_bounds = array<i64: 1, 1, 2, 128>}, {transform_indices = @transform_1, window_bounds = array<i64: 1, 4, 2, 128>}, {transform_indices = @transform_2, window_bounds = array<i64: 1, 1, 2, 128>}]} {
    %c0 = arith.constant 0 : index
    %c0_0 = arith.constant 0 : index
    %c0_1 = arith.constant 0 : index
    %c0_2 = arith.constant 0 : index
    %0 = vector.load %arg3[%c0, %c0_0, %c0_1, %c0_2] : memref<1x4x2x128xf32, #tpu.memory_space<vmem>>, vector<1x4x2x128xf32>
    %1 = vector.shape_cast %0 : vector<1x4x2x128xf32> to vector<4x2x128xf32>
    %cst = arith.constant dense<0xFF800000> : vector<2x128xf32>
    %2 = vector.multi_reduction <maximumf>, %1, %cst [0] : vector<4x2x128xf32> to vector<2x128xf32>
    %3 = vector.shape_cast %2 : vector<2x128xf32> to vector<1x2x128xf32>
    %4 = vector.broadcast %3 : vector<1x2x128xf32> to vector<4x2x128xf32>
    %5 = arith.subf %1, %4 : vector<4x2x128xf32>
    %6 = math.exp %5 : vector<4x2x128xf32>
    %cst_3 = arith.constant dense<0.000000e+00> : vector<2x128xf32>
    %7 = vector.multi_reduction <add>, %6, %cst_3 [0] : vector<4x2x128xf32> to vector<2x128xf32>
    %8 = vector.shape_cast %7 : vector<2x128xf32> to vector<1x2x128xf32>
    %9 = tpu.reciprocal %8 {approx = true} : vector<1x2x128xf32> -> vector<1x2x128xf32>
    %10 = vector.broadcast %9 : vector<1x2x128xf32> to vector<4x2x128xf32>
    %11 = arith.mulf %6, %10 : vector<4x2x128xf32>
    %12 = vector.shape_cast %11 : vector<4x2x128xf32> to vector<1x4x2x128xf32>
    %cst_4 = arith.constant dense<0.000000e+00> : vector<1xf32>
    %13 = vector.multi_reduction <add>, %12, %cst_4 [1, 2, 3] : vector<1x4x2x128xf32> to vector<1xf32>
    %14 = vector.shape_cast %13 : vector<1xf32> to vector<1x1x1x1xf32>
    %15 = vector.extract %14[0, 0, 0, 0] : f32 from vector<1x1x1x1xf32>
    %c0_5 = arith.constant 0 : index
    %c0_6 = arith.constant 0 : index
    %c0_7 = arith.constant 0 : index
    %c0_8 = arith.constant 0 : index
    %16 = vector.load %arg2[%c0_5, %c0_6, %c0_7, %c0_8] : memref<1x1x2x128xi32, #tpu.memory_space<vmem>>, vector<1x1x2x128xi32>
    %17 = vector.shape_cast %16 : vector<1x1x2x128xi32> to vector<1x2x128xi32>
    %c0_i32 = arith.constant 0 : i32
    %18 = vector.broadcast %c0_i32 : i32 to vector<1x2x128xi32>
    %19 = arith.cmpi sge, %17, %18 : vector<1x2x128xi32>
    %c4_i32 = arith.constant 4 : i32
    %20 = vector.broadcast %c4_i32 : i32 to vector<1x2x128xi32>
    %21 = arith.cmpi slt, %17, %20 : vector<1x2x128xi32>
    %22 = arith.andi %19, %21 : vector<1x2x128xi1>
    %23 = arith.extui %22 : vector<1x2x128xi1> to vector<1x2x128xi32>
    %24 = arith.sitofp %23 : vector<1x2x128xi32> to vector<1x2x128xf32>
    %25 = vector.shape_cast %24 : vector<1x2x128xf32> to vector<1x1x2x128xf32>
    %cst_9 = arith.constant dense<0.000000e+00> : vector<1xf32>
    %26 = vector.multi_reduction <add>, %25, %cst_9 [1, 2, 3] : vector<1x1x2x128xf32> to vector<1xf32>
    %27 = vector.shape_cast %26 : vector<1xf32> to vector<1x1x1x1xf32>
    %28 = vector.extract %27[0, 0, 0, 0] : f32 from vector<1x1x1x1xf32>
    %29 = tpu.iota {dimensions = array<i32: 0>} : vector<4x2x128xi32>
    %30 = vector.broadcast %17 : vector<1x2x128xi32> to vector<4x2x128xi32>
    %31 = arith.cmpi eq, %29, %30 : vector<4x2x128xi32>
    %32 = arith.extui %31 : vector<4x2x128xi1> to vector<4x2x128xi32>
    %33 = arith.sitofp %32 : vector<4x2x128xi32> to vector<4x2x128xf32>
    %34 = arith.mulf %11, %33 : vector<4x2x128xf32>
    %35 = vector.shape_cast %34 : vector<4x2x128xf32> to vector<1x4x2x128xf32>
    %cst_10 = arith.constant dense<0.000000e+00> : vector<1xf32>
    %36 = vector.multi_reduction <add>, %35, %cst_10 [1, 2, 3] : vector<1x4x2x128xf32> to vector<1xf32>
    %37 = vector.shape_cast %36 : vector<1xf32> to vector<1x1x1x1xf32>
    %38 = vector.extract %37[0, 0, 0, 0] : f32 from vector<1x1x1x1xf32>
    %39 = arith.addf %15, %28 : f32
    %40 = arith.subf %39, %38 : f32
    %41 = tpu.iota {dimensions = array<i32: 0>} : vector<2x128xi32>
    %c0_i32_11 = arith.constant 0 : i32
    %42 = vector.broadcast %c0_i32_11 : i32 to vector<2x128xi32>
    %43 = arith.cmpi eq, %41, %42 : vector<2x128xi32>
    %44 = vector.broadcast %38 : f32 to vector<2x128xf32>
    %45 = vector.broadcast %40 : f32 to vector<2x128xf32>
    %46 = arith.select %43, %44, %45 : vector<2x128xi1>, vector<2x128xf32>
    %c0_12 = arith.constant 0 : index
    %c0_13 = arith.constant 0 : index
    %c0_14 = arith.constant 0 : index
    %c0_15 = arith.constant 0 : index
    %47 = vector.load %arg4[%c0_12, %c0_13, %c0_14, %c0_15] : memref<1x1x2x128xf32, #tpu.memory_space<vmem>>, vector<1x1x2x128xf32>
    %48 = vector.shape_cast %47 : vector<1x1x2x128xf32> to vector<2x128xf32>
    %49 = vector.shape_cast %46 : vector<2x128xf32> to vector<1x1x2x128xf32>
    tpu.vector_store %arg4[%c0_12, %c0_13, %c0_14, %c0_15], %49 {strides = array<i32>} : memref<1x1x2x128xf32, #tpu.memory_space<vmem>>, vector<1x1x2x128xf32>,
    return
  }
  func.func @transform_0(%arg0: i32, %arg1: i32) -> (i32, i32, i32, i32) {
    %c0_i32 = arith.constant 0 : i32
    %c0_i32_0 = arith.constant 0 : i32
    %c0_i32_1 = arith.constant 0 : i32
    return %arg0, %c0_i32, %arg1, %c0_i32_0 : i32, i32, i32, i32
  }
  func.func @transform_1(%arg0: i32, %arg1: i32) -> (i32, i32, i32, i32) {
    %c0_i32 = arith.constant 0 : i32
    %c0_i32_0 = arith.constant 0 : i32
    %c0_i32_1 = arith.constant 0 : i32
    return %arg0, %c0_i32, %arg1, %c0_i32_0 : i32, i32, i32, i32
  }
  func.func @transform_2(%arg0: i32, %arg1: i32) -> (i32, i32, i32, i32) {
    %c0_i32 = arith.constant 0 : i32
    %c0_i32_0 = arith.constant 0 : i32
    %c0_i32_1 = arith.constant 0 : i32
    return %arg0, %arg1, %c0_i32, %c0_i32_0 : i32, i32, i32, i32
  }
}

</mosaic_0001>

<llo_original>
// kernel: tpu_custom_call.1
$region0: #{tpu_custom_call.1}
  #allocation0 [shape = 'u32[]', space=smem, size = 0x4, offset = 0x4, fixed_abs, tag = 'smem constant byte address 0x4 - core index']
  #allocation1 [shape = 'u32[144,128]{1,0:T(1,128)}', space=vmem, size = 0x12000, scoped, tag = 'internal scratch']
  %s0 = inlined_call_operand.hbm [shape: s32[2,1,2,128], index: 0, kind: input, shape index: {}]
  %s1 = inlined_call_operand.hbm [shape: f32[2,4,2,128], index: 1, kind: input, shape index: {}]
  %s2 = inlined_call_operand.hbm [shape: f32[2,1,2,128], index: 2, kind: output, shape index: {}]
  %s3 = sld [smem:[#allocation0]]
  $region49: #{tpu_custom_call.1} parent=0
    _
  %s5 = ssub.s32 1, %s3
  %s6 = scalar_select 0, %s5, %s3
  $region1: #{tpu_custom_call.1} parent=0
    #allocation2 [shape = 'u8[2048]{0}', space=vmem, size = 0x800, scoped, tag = 'input window, operand 0']
    #allocation3 [shape = 's32[2]{0}', space=sflag, size = 0x8, scoped, tag = 'scoped memory for tpu_custom_call.1']
    #allocation4 [shape = 's32[2]{0}', space=sflag, size = 0x8, scoped, tag = 'scoped memory for tpu_custom_call.1']
    #allocation5 [shape = 'u8[8192]{0}', space=vmem, size = 0x2000, scoped, tag = 'input window, operand 1']
    #allocation6 [shape = 's32[2]{0}', space=sflag, size = 0x8, scoped, tag = 'scoped memory for tpu_custom_call.1']
    #allocation7 [shape = 'u8[2048]{0}', space=vmem, size = 0x800, scoped, tag = 'output window, operand 0']
    %7 = vsyncpa [#allocation3], 0
    %s8 = scalar_lea.sflag [#allocation3], 1
    %9 = vsyncpa %s8, 0
    %10 = vsyncpa [#allocation6], 0
    %s11 = scalar_lea.sflag [#allocation6], 1
    %12 = vsyncpa %s11, 0
    %13 = vsyncpa [#allocation4], 0
    %s14 = scalar_lea.sflag [#allocation4], 1
    %15 = vsyncpa %s14, 0
    loop: start=0, step=1, limit=4
    $region2: #{tpu_custom_call.1} parent=1 // loop_pre_header
      _
    $region3: #{tpu_custom_call.1} parent=1 // loop_header
      %s17 = sphi 0, %s21
      %p18 = scmp.ge.s32.totalorder %s17, 4
      %s24 = sphi 0, %s36
      %s25 = sphi 0, %s32
      %s26 = sphi 0, %s24
      %s27 = sphi 0, %s25
      %s28 = sphi 0, %s26
      %s29 = sphi 0, %s27
      %s41 = sphi 0, %s43
      %s44 = sphi 0, %s41
      %s45 = sphi 0, %s44
      %s61 = sphi 0, %s45
      %s69 = sphi 0, %s71
      %s72 = sphi 0, %s69
      %s73 = sphi 0, %s72
      %s89 = sphi 0, %s73
      %s97 = sphi 0, %s99
      %s100 = sphi 0, %s97
      %s101 = sphi 0, %s100
      %s117 = sphi 0, %s101
    $region4: #{tpu_custom_call.1} parent=1 // loop_header_branch
      %20 = sbr.rel (%p18) target = $region8
    $region5: #{tpu_custom_call.1} parent=1 // loop_body
      %s22 = ssub.s32 %s17, 1
      %s23 = ssub.s32 %s17, 2
      %s30 = sadd.s32 1, %s25
      %p31 = scmp.ge.s32.totalorder %s30, 1
      %s32 = scalar_select %p31, 0, %s30
      %s33 = sadd.s32 1, %s24
      %s34 = scalar_select %p31, %s33, %s24
      %p35 = scmp.ge.s32.totalorder %s34, 2
      %s36 = scalar_select %p35, 0, %s34
      %s37 = ssub.s32 %s24, %s36
      %s38 = ssub.s32 %s25, %s32
      %s39 = sor.u32 %s37, %s38
      %p40 = scmp.eq.s32.totalorder %s39, 0
      %s42 = sadd.s32 %s41, 1
      %s43 = scalar_select %p40, %s41, %s42
      %p46 = pneg %p40
      %p47 = scmp.eq.s32.totalorder %s17, 1
      %p48 = por %p46, %p47
      %p49 = scmp.ne.s32.totalorder %s41, %s44
      %p50 = scmp.eq.s32.totalorder %s17, 0
      %p51 = por %p49, %p50
      %p52 = scmp.ne.s32.totalorder %s41, %s44
      %p53 = scmp.eq.s32.totalorder %s22, 1
      %p54 = por %p52, %p53
      %p55 = scmp.ne.s32.totalorder %s44, %s45
      %p56 = scmp.eq.s32.totalorder %s22, 0
      %p57 = por %p55, %p56
      %p58 = scmp.ne.s32.totalorder %s44, %s45
      %p59 = scmp.eq.s32.totalorder %s23, 1
      %p60 = por %p58, %p59
      %p62 = scmp.ne.s32.totalorder %s45, %s61
      %p63 = scmp.eq.s32.totalorder %s23, 0
      %p64 = por %p62, %p63
      %s65 = ssub.s32 %s24, %s36
      %s66 = ssub.s32 %s25, %s32
      %s67 = sor.u32 %s65, %s66
      %p68 = scmp.eq.s32.totalorder %s67, 0
      %s70 = sadd.s32 %s69, 1
      %s71 = scalar_select %p68, %s69, %s70
      %p74 = pneg %p68
      %p75 = scmp.eq.s32.totalorder %s17, 1
      %p76 = por %p74, %p75
      %p77 = scmp.ne.s32.totalorder %s69, %s72
      %p78 = scmp.eq.s32.totalorder %s17, 0
      %p79 = por %p77, %p78
      %p80 = scmp.ne.s32.totalorder %s69, %s72
      %p81 = scmp.eq.s32.totalorder %s22, 1
      %p82 = por %p80, %p81
      %p83 = scmp.ne.s32.totalorder %s72, %s73
      %p84 = scmp.eq.s32.totalorder %s22, 0
      %p85 = por %p83, %p84
      %p86 = scmp.ne.s32.totalorder %s72, %s73
      %p87 = scmp.eq.s32.totalorder %s23, 1
      %p88 = por %p86, %p87
      %p90 = scmp.ne.s32.totalorder %s73, %s89
      %p91 = scmp.eq.s32.totalorder %s23, 0
      %p92 = por %p90, %p91
      %s93 = ssub.s32 %s24, %s36
      %s94 = ssub.s32 %s25, %s32
      %s95 = sor.u32 %s93, %s94
      %p96 = scmp.eq.s32.totalorder %s95, 0
      %s98 = sadd.s32 %s97, 1
      %s99 = scalar_select %p96, %s97, %s98
      %p102 = pneg %p96
      %p103 = scmp.eq.s32.totalorder %s17, 1
      %p104 = por %p102, %p103
      %p105 = scmp.ne.s32.totalorder %s97, %s100
      %p106 = scmp.eq.s32.totalorder %s17, 0
      %p107 = por %p105, %p106
      %p108 = scmp.ne.s32.totalorder %s97, %s100
      %p109 = scmp.eq.s32.totalorder %s22, 1
      %p110 = por %p108, %p109
      %p111 = scmp.ne.s32.totalorder %s100, %s101
      %p112 = scmp.eq.s32.totalorder %s22, 0
      %p113 = por %p111, %p112
      %p114 = scmp.ne.s32.totalorder %s100, %s101
      %p115 = scmp.eq.s32.totalorder %s23, 1
      %p116 = por %p114, %p115
      %p118 = scmp.ne.s32.totalorder %s101, %s117
      %p119 = scmp.eq.s32.totalorder %s23, 0
      %p120 = por %p118, %p119
      %p121 = scmp.le.s32.totalorder 1, %s17
      %p122 = scmp.lt.s32.totalorder %s17, 3
      %p123 = pnand %p121, %p122
      %p124 = pneg %p123
      // Predicated region
      $region9: #{tpu_custom_call.1} parent=5 // pred_check
        _
      $region10: #{tpu_custom_call.1} parent=5 // pred_check_branch
        %126 = sbr.rel (%p123) target = $region12
      $region11: #{tpu_custom_call.1} parent=5 // pred_region
        %s127 = ssub.s32 %s17, 1
      $region12: #{tpu_custom_call.1} parent=5 // pred_fallthru
        _
      %p128 = scmp.lt.s32.totalorder %s17, 2
      // Predicated region
      $region13: #{tpu_custom_call.1} parent=5 // pred_check
        %p129 = pneg %p128
      $region14: #{tpu_custom_call.1} parent=5 // pred_check_branch
        %131 = sbr.rel (%p129) target = $region16
      $region15: #{tpu_custom_call.1} parent=5 // pred_region
        // Predicated region
        $region17: #{tpu_custom_call.1} parent=15 // pred_check
          %p132 = pneg %p51
        $region18: #{tpu_custom_call.1} parent=15 // pred_check_branch
          %134 = sbr.rel (%p132) target = $region20
        $region19: #{tpu_custom_call.1} parent=15 // pred_region
          %s135 = sand.u32 %s41, 1
          %s136 = scalar_lea.sflag [#allocation3], %s135
          %s137 = sand.u32 %s41, 1
          %s138 = smul.addr %s137, 2
          %s139 = scalar_lea.vmem [#allocation2], %s138
          %s141 = ssub.s32 32, 32
          %142 = vsyncadd %s136, %s141
          %s143 = sadd.s32 %s25, %s24
          %s144 = smul.addr %s143, 32
          %s145 = scalar_lea.hbm %s0, %s144
          %s147 = sshll.u32 %s139, 4
          %s148 = int_to_ptr.vmem [resolvable:$true] %s147
          %150 = dma.hbm_to_vmem [thread:$0]  %s145, 32, %s148, %s136
        $region20: #{tpu_custom_call.1} parent=15 // pred_fallthru
          _
        // Predicated region
        $region21: #{tpu_custom_call.1} parent=15 // pred_check
          %p151 = pneg %p79
        $region22: #{tpu_custom_call.1} parent=15 // pred_check_branch
          %153 = sbr.rel (%p151) target = $region24
        $region23: #{tpu_custom_call.1} parent=15 // pred_region
          %s154 = sand.u32 %s69, 1
          %s155 = scalar_lea.sflag [#allocation6], %s154
          %s156 = sand.u32 %s69, 1
          %s157 = smul.addr %s156, 8
          %s158 = scalar_lea.vmem [#allocation5], %s157
          %s160 = ssub.s32 128, 128
          %161 = vsyncadd %s155, %s160
          %s162 = smul.addr %s24, 4
          %s163 = sadd.s32 %s25, %s162
          %s164 = smul.addr %s163, 32
          %s165 = scalar_lea.hbm %s1, %s164
          %s166 = sshll.u32 %s158, 4
          %s167 = int_to_ptr.vmem [resolvable:$true] %s166
          %172 = dma.hbm_to_vmem [thread:$0]  %s165, 128, %s167, %s155, 32, 32, 2
        $region24: #{tpu_custom_call.1} parent=15 // pred_fallthru
          _
      $region16: #{tpu_custom_call.1} parent=5 // pred_fallthru
        _
      %p173 = scmp.le.s32.totalorder 1, %s17
      %p174 = scmp.lt.s32.totalorder %s17, 3
      %p175 = pnand %p173, %p174
      %p176 = pneg %p175
      // Predicated region
      $region25: #{tpu_custom_call.1} parent=5 // pred_check
        _
      $region26: #{tpu_custom_call.1} parent=5 // pred_check_branch
        %178 = sbr.rel (%p175) target = $region28
      $region27: #{tpu_custom_call.1} parent=5 // pred_region
        %s179 = ssub.s32 %s17, 1
        %s180 = sand.u32 %s44, 1
        %s181 = scalar_lea.sflag [#allocation3], %s180
        %s182 = sand.u32 %s44, 1
        %s183 = smul.addr %s182, 2
        %s184 = scalar_lea.vmem [#allocation2], %s183
        // Predicated region
        $region29: #{tpu_custom_call.1} parent=27 // pred_check
          %p185 = pneg %p57
        $region30: #{tpu_custom_call.1} parent=27 // pred_check_branch
          %187 = sbr.rel (%p185) target = $region32
        $region31: #{tpu_custom_call.1} parent=27 // pred_region
          %188 = dma.done %s181, 32
        $region32: #{tpu_custom_call.1} parent=27 // pred_fallthru
          _
        %s189 = sand.u32 %s72, 1
        %s190 = scalar_lea.sflag [#allocation6], %s189
        %s191 = sand.u32 %s72, 1
        %s192 = smul.addr %s191, 8
        %s193 = scalar_lea.vmem [#allocation5], %s192
        // Predicated region
        $region33: #{tpu_custom_call.1} parent=27 // pred_check
          %p194 = pneg %p85
        $region34: #{tpu_custom_call.1} parent=27 // pred_check_branch
          %196 = sbr.rel (%p194) target = $region36
        $region35: #{tpu_custom_call.1} parent=27 // pred_region
          %197 = dma.done %s190, 128
        $region36: #{tpu_custom_call.1} parent=27 // pred_fallthru
          _
        %s198 = sand.u32 %s44, 1
        %s199 = scalar_lea.sflag [#allocation3], %s198
        %s200 = sand.u32 %s44, 1
        %s201 = smul.addr %s200, 2
        %s202 = scalar_lea.vmem [#allocation2], %s201
        %p203 = pneg %p57
        %p204 = pneg %p54
        %s205 = sand.u32 %s72, 1
        %s206 = scalar_lea.sflag [#allocation6], %s205
        %s207 = sand.u32 %s72, 1
        %s208 = smul.addr %s207, 8
        %s209 = scalar_lea.vmem [#allocation5], %s208
        %p210 = pneg %p85
        %p211 = pneg %p82
        %p212 = pneg %p113
        %p213 = pneg %p110
        %s214 = sand.u32 %s100, 1
        %s215 = scalar_lea.sflag [#allocation4], %s214
        %s216 = sand.u32 %s100, 1
        %s217 = smul.addr %s216, 2
        %s218 = scalar_lea.vmem [#allocation7], %s217
        %v219 = vld [vmem:[%s193] sm:$0x3]
        %v220 = vld [vmem:[%s193 + $0x2] sm:$0x3]
        %v221 = vld [vmem:[%s193 + $0x4] sm:$0x3]
        %v222 = vld [vmem:[%s193 + $0x6] sm:$0x3]
        %vm223 = vcmask 1041408
        %v224 = vsel %vm223, %v219, -inf
        %v225 = vsel %vm223, %v220, -inf
        %v226 = vsel %vm223, %v221, -inf
        %v227 = vsel %vm223, %v222, -inf
        %v228 = vmax.f32 %v224, %v225
        %v229 = vmax.f32 %v226, %v227
        %v230 = vmax.f32 %v228, %v229
        %v231 = vsub.f32 %v219, %v230
        %v232 = vsub.f32 %v220, %v230
        %v233 = vsub.f32 %v221, %v230
        %v234 = vsub.f32 %v222, %v230
        %v235 = vmul.f32 %v231, 1.442695
        %v236 = vpow.pop %v235
        %v237 = vmul.f32 %v232, 1.442695
        %v238 = vpow.pop %v237
        %v239 = vmul.f32 %v233, 1.442695
        %v240 = vpow.pop %v239
        %v241 = vmul.f32 %v234, 1.442695
        %v242 = vpow.pop %v241
        %v243 = vsel %vm223, %v236, 0.0
        %v244 = vsel %vm223, %v238, 0.0
        %v245 = vadd.f32 %v243, %v244
        %v246 = vsel %vm223, %v240, 0.0
        %v247 = vadd.f32 %v245, %v246
        %v248 = vsel %vm223, %v242, 0.0
        %v249 = vadd.f32 %v247, %v248
        %v250 = vrcp.pop %v249
        %v251 = vmul.f32 %v236, %v250
        %v252 = vmul.f32 %v238, %v250
        %v253 = vmul.f32 %v240, %v250
        %v254 = vmul.f32 %v242, %v250
        %v255 = vsel %vm223, %v251, 0.0
        %v256 = vsel %vm223, %v252, 0.0
        %v257 = vadd.f32 %v255, %v256
        %v258 = vsel %vm223, %v253, 0.0
        %v259 = vadd.f32 %v257, %v258
        %v260 = vsel %vm223, %v254, 0.0
        %v261 = vadd.f32 %v259, %v260
        %262 = vadd.xlane.f32.xlu0 %v261
        %v263 = vpop.xlane.xlu0 %262
        %v264 = vrot.slane %v263, 4
        %v265 = vadd.f32 %v263, %v264
        %v266 = vrot.slane %v265, 2
        %v267 = vadd.f32 %v265, %v266
        %v268 = vrot.slane %v267, 1
        %v269 = vadd.f32 %v267, %v268
        %s270 = vtos %v269
        %v271 = vld [vmem:[%s184] sm:$0x3]
        %vm272 = vcmp.ge.s32.totalorder %v271, 0
        %vm273 = vcmp.lt.s32.totalorder %v271, 4
        %vm274 = vmand %vm272, %vm273
        %v275 = vsel %vm274, 1, 0
        %v276 = vcvt.s32.f32 %v275
        %v277 = vsel %vm223, %v276, 0.0
        %278 = vadd.xlane.f32.xlu0 %v277
        %v279 = vpop.xlane.xlu0 %278
        %v280 = vrot.slane %v279, 4
        %v281 = vadd.f32 %v279, %v280
        %v282 = vrot.slane %v281, 2
        %v283 = vadd.f32 %v281, %v282
        %v284 = vrot.slane %v283, 1
        %v285 = vadd.f32 %v283, %v284
        %s286 = vtos %v285
        %vm287 = vcmp.eq.s32.totalorder %v271, 0
        %vm288 = vcmp.eq.s32.totalorder %v271, 1
        %vm289 = vcmp.eq.s32.totalorder %v271, 2
        %vm290 = vcmp.eq.s32.totalorder %v271, 3
        %v291 = vsel %vm287, 1, 0
        %v292 = vsel %vm288, 1, 0
        %v293 = vsel %vm289, 1, 0
        %v294 = vsel %vm290, 1, 0
        %v295 = vcvt.s32.f32 %v291
        %v296 = vcvt.s32.f32 %v292
        %v297 = vcvt.s32.f32 %v293
        %v298 = vcvt.s32.f32 %v294
        %v299 = vmul.f32 %v251, %v295
        %v300 = vmul.f32 %v252, %v296
        %v301 = vmul.f32 %v253, %v297
        %v302 = vmul.f32 %v254, %v298
        %v303 = vsel %vm223, %v299, 0.0
        %v304 = vsel %vm223, %v300, 0.0
        %v305 = vadd.f32 %v303, %v304
        %v306 = vsel %vm223, %v301, 0.0
        %v307 = vadd.f32 %v305, %v306
        %v308 = vsel %vm223, %v302, 0.0
        %v309 = vadd.f32 %v307, %v308
        %310 = vadd.xlane.f32.xlu0 %v309
        %v311 = vpop.xlane.xlu0 %310
        %v312 = vrot.slane %v311, 4
        %v313 = vadd.f32 %v311, %v312
        %v314 = vrot.slane %v313, 2
        %v315 = vadd.f32 %v313, %v314
        %v316 = vrot.slane %v315, 1
        %v317 = vadd.f32 %v315, %v316
        %s318 = vtos %v317
        %s319 = sadd.f32 %s270, %s286
        %s320 = ssub.f32 %s319, %s318
        %v321 = vlaneseq
        %v322 = vshrl.u32 %v321, 7
        %vm323 = vcmp.eq.s32.totalorder %v322, 0
        %v324 = vstv %s318
        %v325 = vstv %s320
        %v326 = vsel %vm323, %v324, %v325
        %327 = vst [vmem:[%s218] sm:$0x3] %v326
        %s328 = sand.u32 %s100, 1
        %s329 = scalar_lea.sflag [#allocation4], %s328
        %s330 = sand.u32 %s100, 1
        %s331 = smul.addr %s330, 2
        %s332 = scalar_lea.vmem [#allocation7], %s331
        // Predicated region
        $region37: #{tpu_custom_call.1} parent=27 // pred_check
          %p333 = pneg %p110
        $region38: #{tpu_custom_call.1} parent=27 // pred_check_branch
          %335 = sbr.rel (%p333) target = $region40
        $region39: #{tpu_custom_call.1} parent=27 // pred_region
          %s337 = ssub.s32 32, 32
          %338 = vsyncadd %s329, %s337
          %s339 = sadd.s32 %s27, %s26
          %s340 = smul.addr %s339, 32
          %s341 = scalar_lea.hbm %s2, %s340
          %s343 = sshll.u32 %s332, 4
          %s344 = int_to_ptr.vmem [resolvable:$true] %s343
          %346 = dma.vmem_to_hbm [thread:$0]  %s344, 32, %s341, %s329
        $region40: #{tpu_custom_call.1} parent=27 // pred_fallthru
          _
      $region28: #{tpu_custom_call.1} parent=5 // pred_fallthru
        _
      %p347 = scmp.le.s32.totalorder 2, %s17
      // Predicated region
      $region41: #{tpu_custom_call.1} parent=5 // pred_check
        %p348 = pneg %p347
      $region42: #{tpu_custom_call.1} parent=5 // pred_check_branch
        %350 = sbr.rel (%p348) target = $region44
      $region43: #{tpu_custom_call.1} parent=5 // pred_region
        %s351 = ssub.s32 %s17, 2
        // Predicated region
        $region45: #{tpu_custom_call.1} parent=43 // pred_check
          %p352 = pneg %p116
        $region46: #{tpu_custom_call.1} parent=43 // pred_check_branch
          %354 = sbr.rel (%p352) target = $region48
        $region47: #{tpu_custom_call.1} parent=43 // pred_region
          %s355 = sand.u32 %s101, 1
          %s356 = scalar_lea.sflag [#allocation4], %s355
          %s357 = sand.u32 %s101, 1
          %s358 = smul.addr %s357, 2
          %s359 = scalar_lea.vmem [#allocation7], %s358
          %360 = dma.done %s356, 32
        $region48: #{tpu_custom_call.1} parent=43 // pred_fallthru
          _
      $region44: #{tpu_custom_call.1} parent=5 // pred_fallthru
        _
    $region6: #{tpu_custom_call.1} parent=1 // loop_footer
      %s21 = sadd.s32 1, %s17
    $region7: #{tpu_custom_call.1} parent=1 // loop_footer_branch
      %16 = sbr.rel target = $region3
    $region8: #{tpu_custom_call.1} parent=1 // loop_exit
      _
    %361 = vsyncpa [#allocation3], 1
    %s362 = scalar_lea.sflag [#allocation3], 1
    %363 = vsyncpa %s362, 1
    %364 = vsyncpa [#allocation6], 1
    %s365 = scalar_lea.sflag [#allocation6], 1
    %366 = vsyncpa %s365, 1
    %367 = vsyncpa [#allocation4], 1
    %s368 = scalar_lea.sflag [#allocation4], 1
    %369 = vsyncpa %s368, 1

</llo_original>
